<compile_context>
chip_gen: v7x
topology: tpu7x:2x2x1
jax: 0.10.0
libtpu: 0.0.40
codegen_flags: <defaults>
</compile_context>

<pallas_src>
import functools

import jax
import jax.numpy as jnp
import numpy as np
from jax import lax
from jax.experimental import pallas as pl
from jax.experimental.pallas import tpu as pltpu


# --------------------------------------------------------------------------- #
# In-kernel ReLU + Conv1d for one batch row (shared by both phases).
# --------------------------------------------------------------------------- #
def _relu_conv(x_ref, w_ref, *, K, S, Cin, Lout):
    """x_ref: (S*Cin, Lph) stride-phase-major row; w_ref: (K, Cout, Cin).

    Returns y = Conv1d(ReLU(x)) for this row, shape (Cout, Lout), float32.
    Taps are static contiguous slices in VMEM; K accumulating MXU matmuls
    (f32 accumulation via preferred_element_type).
    """
    xv = jnp.maximum(x_ref[...], 0)                    # ReLU once per row
    y = None
    for k in range(K):                                  # static unroll over taps
        p, q = k % S, k // S
        tap = xv[p * Cin:(p + 1) * Cin, q:q + Lout]     # (Cin, Lout) static slice
        yk = jnp.dot(w_ref[k], tap, preferred_element_type=jnp.float32)
        y = yk if y is None else y + yk
    return y                                            # (Cout, Lout) f32


def _conv_stats_kernel(x_ref, w_ref, sum_ref, css_ref, *, K, S, Cin, Lout):
    """Phase 1: per-row BN partial statistics (written once per batch row).

    sum_ref: (Cout, 1)  sum_l y
    css_ref: (Cout, 1)  sum_l (y - row_mean)^2   (centered -> no cancellation)
    """
    y = _relu_conv(x_ref, w_ref, K=K, S=S, Cin=Cin, Lout=Lout)
    s = jnp.sum(y, axis=1, keepdims=True)               # (Cout, 1)
    m = s * (1.0 / Lout)
    sum_ref[...] = s
    css_ref[...] = jnp.sum((y - m) ** 2, axis=1, keepdims=True)


def _conv_bn_kernel(x_ref, w_ref, scale_ref, bias_ref, out_ref, *, K, S, Cin, Lout):
    """Phase 2: recompute conv (cheaper than re-reading a stored y) and fuse BN."""
    y = _relu_conv(x_ref, w_ref, K=K, S=S, Cin=Cin, Lout=Lout)
    out_ref[...] = (y * scale_ref[...] + bias_ref[...]).astype(out_ref.dtype)


# --------------------------------------------------------------------------- #
# Wrapper
# --------------------------------------------------------------------------- #
def _prepare_phases(x, stride):
    """Stride-phase layout: phases[n, p*Cin + ci, q] = x[n, ci, stride*q + p].

    For stride==1 this is x itself (zero-copy).  For stride>1 it is a single
    |x|-sized relayout so every conv tap in the kernel is a *contiguous* slice
    (no strided lane loads, no K-fold im2col expansion).
    """
    N, Cin, L = x.shape
    if stride == 1:
        return x, L
    Lph = -(-L // stride)
    pad = stride * Lph - L
    if pad:
        x = jnp.pad(x, ((0, 0), (0, 0), (0, pad)))
    ph = x.reshape(N, Cin, Lph, stride).transpose(0, 3, 1, 2)
    return ph.reshape(N, stride * Cin, Lph), Lph


@functools.partial(jax.jit,
                   static_argnames=("stride", "eps", "compute_dtype", "out_dtype"))
def relu_conv_bn(x_ncl, weight_oik, gamma, beta, *, stride=1, eps=1e-3,
                 compute_dtype=jnp.float32, out_dtype=jnp.float32):
    """x_ncl: (N, Cin, L); weight_oik: (Cout, Cin, K). Returns (N, Cout, Lout)."""
    N, Cin, L = x_ncl.shape
    Cout, _, K = weight_oik.shape
    S = stride
    Lout = (L - K) // S + 1

    # Layout plumbing, hoisted out of the grid (casts done once, not per step).
    phases, Lph = _prepare_phases(x_ncl.astype(compute_dtype), S)   # (N, S*Cin, Lph)
    w3 = jnp.transpose(weight_oik, (2, 0, 1)).astype(compute_dtype)  # (K, Cout, Cin)

    grid = (N,)
    sem = pltpu.CompilerParams(dimension_semantics=("parallel",))
    x_spec = pl.BlockSpec((None, S * Cin, Lph), lambda n: (n, 0, 0))
    w_spec = pl.BlockSpec((K, Cout, Cin), lambda n: (0, 0, 0))       # grid-resident

    # ---- phase 1: ReLU+conv -> per-row BN partial stats (tiny outputs) ------
    sum_n, css_n = pl.pallas_call(
        functools.partial(_conv_stats_kernel, K=K, S=S, Cin=Cin, Lout=Lout),
        grid=grid,
        in_specs=[x_spec, w_spec],
        out_specs=(pl.BlockSpec((None, Cout, 1), lambda n: (n, 0, 0)),
                   pl.BlockSpec((None, Cout, 1), lambda n: (n, 0, 0))),
        out_shape=(jax.ShapeDtypeStruct((N, Cout, 1), jnp.float32),
                   jax.ShapeDtypeStruct((N, Cout, 1), jnp.float32)),
        compiler_params=sem,
    )(phases, w3)

    # ---- BN statistics (Chan parallel-variance combine over the N rows) -----
    count = N * Lout
    row_sum = sum_n[:, :, 0]                               # (N, Cout)
    row_css = css_n[:, :, 0]                               # (N, Cout)
    row_mean = row_sum / Lout
    mean = jnp.sum(row_sum, axis=0) / count                # (Cout,)
    total_ss = jnp.sum(row_css, axis=0) + Lout * jnp.sum((row_mean - mean) ** 2, axis=0)
    var = total_ss / count                                 # biased variance
    inv_std = lax.rsqrt(var + eps)
    scale = (gamma.astype(jnp.float32) * inv_std)[:, None]             # (Cout, 1)
    bias = beta.astype(jnp.float32)[:, None] - mean[:, None] * scale   # (Cout, 1)

    # ---- phase 2: recompute conv, fuse normalize+affine, exact-shape output -
    out = pl.pallas_call(
        functools.partial(_conv_bn_kernel, K=K, S=S, Cin=Cin, Lout=Lout),
        grid=grid,
        in_specs=[x_spec, w_spec,
                  pl.BlockSpec((Cout, 1), lambda n: (0, 0)),
                  pl.BlockSpec((Cout, 1), lambda n: (0, 0))],
        out_specs=pl.BlockSpec((None, Cout, Lout), lambda n: (n, 0, 0)),
        out_shape=jax.ShapeDtypeStruct((N, Cout, Lout), out_dtype),
        compiler_params=sem,
    )(phases, w3, scale, bias)
    return out


# --------------------------------------------------------------------------- #
# Pure-JAX reference mirroring the PyTorch forward (training-mode BN).
# --------------------------------------------------------------------------- #
def reference(x_ncl, weight_oik, gamma, beta, *, stride=1, eps=1e-3):
    x = jnp.maximum(x_ncl.astype(jnp.float32), 0.0)
    y = lax.conv_general_dilated(
        x, weight_oik.astype(jnp.float32),
        window_strides=(stride,), padding="VALID",
        dimension_numbers=("NCH", "OIH", "NCH"))
    mean = jnp.mean(y, axis=(0, 2), keepdims=True)
    var = jnp.mean((y - mean) ** 2, axis=(0, 2), keepdims=True)
    yn = (y - mean) / jnp.sqrt(var + eps)
    return yn * gamma.reshape(1, -1, 1) + beta.reshape(1, -1, 1)


if __name__ == "__main__":
    # Small shapes consistent with the module: batch=2, Cin=4, L=16, Cout=8, K=3.
    N, Cin, L = 2, 4, 16
    Cout, K = 8, 3

    key = jax.random.PRNGKey(0)
    kx, kw, kg, kb = jax.random.split(key, 4)
    x = jax.random.normal(kx, (N, Cin, L), dtype=jnp.float32)
    conv_w = jax.random.normal(kw, (Cout, Cin, K), dtype=jnp.float32) * 0.1
    gamma = 1.0 + 0.1 * jax.random.normal(kg, (Cout,), dtype=jnp.float32)
    beta = 0.1 * jax.random.normal(kb, (Cout,), dtype=jnp.float32)

    # f32 ingest: matches PyTorch forward to tight tolerance.
    for stride in (1, 2):
        out = relu_conv_bn(x, conv_w, gamma, beta, stride=stride, eps=1e-3)
        out = jax.block_until_ready(out)
        ref = reference(x, conv_w, gamma, beta, stride=stride, eps=1e-3)
        np.testing.assert_allclose(np.asarray(out), np.asarray(ref),
                                   atol=1e-4, rtol=1e-4)

    # bf16 MXU-ingest variant (halves input DMA, single-pass MXU issue on
    # v5e/v6e/v7x); accumulation stays f32 -- checked at loose tolerance only,
    # as flagged in the review.
    out_bf16 = relu_conv_bn(x, conv_w, gamma, beta, stride=1, eps=1e-3,
                            compute_dtype=jnp.bfloat16)
    out_bf16 = jax.block_until_ready(out_bf16)
    ref = reference(x, conv_w, gamma, beta, stride=1, eps=1e-3)
    np.testing.assert_allclose(np.asarray(out_bf16), np.asarray(ref),
                               atol=1e-1, rtol=1e-1)

    print("KERNEL_OK")
</pallas_src>

<mosaic_0001>
module attributes {stable_mosaic.version = 11 : i64} {
  func.func @_conv_stats_kernel(%arg0: i32, %arg1: memref<1x4x16xf32, #tpu.memory_space<vmem>>, %arg2: memref<3x8x4xf32, #tpu.memory_space<vmem>>, %arg3: memref<1x8x1xf32, #tpu.memory_space<vmem>>, %arg4: memref<1x8x1xf32, #tpu.memory_space<vmem>>) attributes {dimension_semantics = [#tpu.dimension_semantics<parallel>], iteration_bounds = array<i64: 2>, scalar_prefetch = 0 : i64, scratch_operands = 0 : i64, tpu.core_type = #tpu.core_type<tc>, window_params = [{transform_indices = @transform_0, window_bounds = array<i64: 1, 4, 16>}, {pipeline_mode = #tpu.pipeline_mode<synchronous>, transform_indices = @transform_1, window_bounds = array<i64: 3, 8, 4>}, {transform_indices = @transform_2, window_bounds = array<i64: 1, 8, 1>}, {transform_indices = @transform_3, window_bounds = array<i64: 1, 8, 1>}]} {
    %c0 = arith.constant 0 : index
    %c0_0 = arith.constant 0 : index
    %c0_1 = arith.constant 0 : index
    %0 = vector.load %arg1[%c0, %c0_0, %c0_1] : memref<1x4x16xf32, #tpu.memory_space<vmem>>, vector<1x4x16xf32>
    %1 = vector.shape_cast %0 : vector<1x4x16xf32> to vector<4x16xf32>
    %cst = arith.constant 0.000000e+00 : f32
    %2 = vector.broadcast %cst : f32 to vector<4x16xf32>
    %3 = arith.maximumf %1, %2 : vector<4x16xf32>
    %4 = vector.extract_strided_slice %3 {offsets = [0, 0], sizes = [4, 14], strides = [1, 1]} : vector<4x16xf32> to vector<4x14xf32>
    %c0_2 = arith.constant 0 : index
    %c0_3 = arith.constant 0 : index
    %c0_4 = arith.constant 0 : index
    %5 = vector.load %arg2[%c0_2, %c0_3, %c0_4] : memref<3x8x4xf32, #tpu.memory_space<vmem>>, vector<1x8x4xf32>
    %6 = vector.shape_cast %5 : vector<1x8x4xf32> to vector<8x4xf32>
    %cst_5 = arith.constant dense<0.000000e+00> : vector<8x14xf32>
    %7 = tpu.matmul %6, %4, %cst_5 {dimension_numbers = #tpu.dot_dimension_numbers<[1], [0], [0], [1], [0, 0, 1, 1], [], []>} : vector<8x4xf32>, vector<4x14xf32>, vector<8x14xf32> -> vector<8x14xf32>
    %8 = vector.extract_strided_slice %3 {offsets = [0, 1], sizes = [4, 14], strides = [1, 1]} : vector<4x16xf32> to vector<4x14xf32>
    %c1 = arith.constant 1 : index
    %c0_6 = arith.constant 0 : index
    %c0_7 = arith.constant 0 : index
    %9 = vector.load %arg2[%c1, %c0_6, %c0_7] : memref<3x8x4xf32, #tpu.memory_space<vmem>>, vector<1x8x4xf32>
    %10 = vector.shape_cast %9 : vector<1x8x4xf32> to vector<8x4xf32>
    %cst_8 = arith.constant dense<0.000000e+00> : vector<8x14xf32>
    %11 = tpu.matmul %10, %8, %cst_8 {dimension_numbers = #tpu.dot_dimension_numbers<[1], [0], [0], [1], [0, 0, 1, 1], [], []>} : vector<8x4xf32>, vector<4x14xf32>, vector<8x14xf32> -> vector<8x14xf32>
    %12 = arith.addf %7, %11 : vector<8x14xf32>
    %13 = vector.extract_strided_slice %3 {offsets = [0, 2], sizes = [4, 14], strides = [1, 1]} : vector<4x16xf32> to vector<4x14xf32>
    %c2 = arith.constant 2 : index
    %c0_9 = arith.constant 0 : index
    %c0_10 = arith.constant 0 : index
    %14 = vector.load %arg2[%c2, %c0_9, %c0_10] : memref<3x8x4xf32, #tpu.memory_space<vmem>>, vector<1x8x4xf32>
    %15 = vector.shape_cast %14 : vector<1x8x4xf32> to vector<8x4xf32>
    %cst_11 = arith.constant dense<0.000000e+00> : vector<8x14xf32>
    %16 = tpu.matmul %15, %13, %cst_11 {dimension_numbers = #tpu.dot_dimension_numbers<[1], [0], [0], [1], [0, 0, 1, 1], [], []>} : vector<8x4xf32>, vector<4x14xf32>, vector<8x14xf32> -> vector<8x14xf32>
    %17 = arith.addf %12, %16 : vector<8x14xf32>
    %cst_12 = arith.constant dense<0.000000e+00> : vector<8xf32>
    %18 = vector.multi_reduction <add>, %17, %cst_12 [1] : vector<8x14xf32> to vector<8xf32>
    %19 = vector.shape_cast %18 : vector<8xf32> to vector<8x1xf32>
    %cst_13 = arith.constant 0.0714285746 : f32
    %20 = vector.broadcast %cst_13 : f32 to vector<8x1xf32>
    %21 = arith.mulf %19, %20 : vector<8x1xf32>
    %c0_14 = arith.constant 0 : index
    %c0_15 = arith.constant 0 : index
    %c0_16 = arith.constant 0 : index
    %22 = vector.load %arg3[%c0_14, %c0_15, %c0_16] : memref<1x8x1xf32, #tpu.memory_space<vmem>>, vector<1x8x1xf32>
    %23 = vector.shape_cast %22 : vector<1x8x1xf32> to vector<8x1xf32>
    %24 = vector.shape_cast %19 : vector<8x1xf32> to vector<1x8x1xf32>
    tpu.vector_store %arg3[%c0_14, %c0_15, %c0_16], %24 {strides = array<i32>} : memref<1x8x1xf32, #tpu.memory_space<vmem>>, vector<1x8x1xf32>,
    %25 = vector.broadcast %21 : vector<8x1xf32> to vector<8x14xf32>
    %26 = arith.subf %17, %25 : vector<8x14xf32>
    %27 = arith.mulf %26, %26 : vector<8x14xf32>
    %cst_17 = arith.constant dense<0.000000e+00> : vector<8xf32>
    %28 = vector.multi_reduction <add>, %27, %cst_17 [1] : vector<8x14xf32> to vector<8xf32>
    %29 = vector.shape_cast %28 : vector<8xf32> to vector<8x1xf32>
    %c0_18 = arith.constant 0 : index
    %c0_19 = arith.constant 0 : index
    %c0_20 = arith.constant 0 : index
    %30 = vector.load %arg4[%c0_18, %c0_19, %c0_20] : memref<1x8x1xf32, #tpu.memory_space<vmem>>, vector<1x8x1xf32>
    %31 = vector.shape_cast %30 : vector<1x8x1xf32> to vector<8x1xf32>
    %32 = vector.shape_cast %29 : vector<8x1xf32> to vector<1x8x1xf32>
    tpu.vector_store %arg4[%c0_18, %c0_19, %c0_20], %32 {strides = array<i32>} : memref<1x8x1xf32, #tpu.memory_space<vmem>>, vector<1x8x1xf32>,
    return
  }
  func.func @transform_0(%arg0: i32) -> (i32, i32, i32) {
    %c0_i32 = arith.constant 0 : i32
    %c0_i32_0 = arith.constant 0 : i32
    %c0_i32_1 = arith.constant 0 : i32
    return %arg0, %c0_i32, %c0_i32_0 : i32, i32, i32
  }
  func.func @transform_1(%arg0: i32) -> (i32, i32, i32) {
    %c0_i32 = arith.constant 0 : i32
    %c0_i32_0 = arith.constant 0 : i32
    %c0_i32_1 = arith.constant 0 : i32
    %c0_i32_2 = arith.constant 0 : i32
    return %c0_i32, %c0_i32_0, %c0_i32_1 : i32, i32, i32
  }
  func.func @transform_2(%arg0: i32) -> (i32, i32, i32) {
    %c0_i32 = arith.constant 0 : i32
    %c0_i32_0 = arith.constant 0 : i32
    %c0_i32_1 = arith.constant 0 : i32
    return %arg0, %c0_i32, %c0_i32_0 : i32, i32, i32
  }
  func.func @transform_3(%arg0: i32) -> (i32, i32, i32) {
    %c0_i32 = arith.constant 0 : i32
    %c0_i32_0 = arith.constant 0 : i32
    %c0_i32_1 = arith.constant 0 : i32
    return %arg0, %c0_i32, %c0_i32_0 : i32, i32, i32
  }
}

module attributes {stable_mosaic.version = 11 : i64} {
  func.func @_conv_bn_kernel(%arg0: i32, %arg1: memref<1x4x16xf32, #tpu.memory_space<vmem>>, %arg2: memref<3x8x4xf32, #tpu.memory_space<vmem>>, %arg3: memref<8x1xf32, #tpu.memory_space<vmem>>, %arg4: memref<8x1xf32, #tpu.memory_space<vmem>>, %arg5: memref<1x8x14xf32, #tpu.memory_space<vmem>>) attributes {dimension_semantics = [#tpu.dimension_semantics<parallel>], iteration_bounds = array<i64: 2>, scalar_prefetch = 0 : i64, scratch_operands = 0 : i64, tpu.core_type = #tpu.core_type<tc>, window_params = [{transform_indices = @transform_0, window_bounds = array<i64: 1, 4, 16>}, {pipeline_mode = #tpu.pipeline_mode<synchronous>, transform_indices = @transform_1, window_bounds = array<i64: 3, 8, 4>}, {pipeline_mode = #tpu.pipeline_mode<synchronous>, transform_indices = @transform_2, window_bounds = array<i64: 8, 1>}, {pipeline_mode = #tpu.pipeline_mode<synchronous>, transform_indices = @transform_3, window_bounds = array<i64: 8, 1>}, {transform_indices = @transform_4, window_bounds = array<i64: 1, 8, 14>}]} {
    %c0 = arith.constant 0 : index
    %c0_0 = arith.constant 0 : index
    %c0_1 = arith.constant 0 : index
    %0 = vector.load %arg1[%c0, %c0_0, %c0_1] : memref<1x4x16xf32, #tpu.memory_space<vmem>>, vector<1x4x16xf32>
    %1 = vector.shape_cast %0 : vector<1x4x16xf32> to vector<4x16xf32>
    %cst = arith.constant 0.000000e+00 : f32
    %2 = vector.broadcast %cst : f32 to vector<4x16xf32>
    %3 = arith.maximumf %1, %2 : vector<4x16xf32>
    %4 = vector.extract_strided_slice %3 {offsets = [0, 0], sizes = [4, 14], strides = [1, 1]} : vector<4x16xf32> to vector<4x14xf32>
    %c0_2 = arith.constant 0 : index
    %c0_3 = arith.constant 0 : index
    %c0_4 = arith.constant 0 : index
    %5 = vector.load %arg2[%c0_2, %c0_3, %c0_4] : memref<3x8x4xf32, #tpu.memory_space<vmem>>, vector<1x8x4xf32>
    %6 = vector.shape_cast %5 : vector<1x8x4xf32> to vector<8x4xf32>
    %cst_5 = arith.constant dense<0.000000e+00> : vector<8x14xf32>
    %7 = tpu.matmul %6, %4, %cst_5 {dimension_numbers = #tpu.dot_dimension_numbers<[1], [0], [0], [1], [0, 0, 1, 1], [], []>} : vector<8x4xf32>, vector<4x14xf32>, vector<8x14xf32> -> vector<8x14xf32>
    %8 = vector.extract_strided_slice %3 {offsets = [0, 1], sizes = [4, 14], strides = [1, 1]} : vector<4x16xf32> to vector<4x14xf32>
    %c1 = arith.constant 1 : index
    %c0_6 = arith.constant 0 : index
    %c0_7 = arith.constant 0 : index
    %9 = vector.load %arg2[%c1, %c0_6, %c0_7] : memref<3x8x4xf32, #tpu.memory_space<vmem>>, vector<1x8x4xf32>
    %10 = vector.shape_cast %9 : vector<1x8x4xf32> to vector<8x4xf32>
    %cst_8 = arith.constant dense<0.000000e+00> : vector<8x14xf32>
    %11 = tpu.matmul %10, %8, %cst_8 {dimension_numbers = #tpu.dot_dimension_numbers<[1], [0], [0], [1], [0, 0, 1, 1], [], []>} : vector<8x4xf32>, vector<4x14xf32>, vector<8x14xf32> -> vector<8x14xf32>
    %12 = arith.addf %7, %11 : vector<8x14xf32>
    %13 = vector.extract_strided_slice %3 {offsets = [0, 2], sizes = [4, 14], strides = [1, 1]} : vector<4x16xf32> to vector<4x14xf32>
    %c2 = arith.constant 2 : index
    %c0_9 = arith.constant 0 : index
    %c0_10 = arith.constant 0 : index
    %14 = vector.load %arg2[%c2, %c0_9, %c0_10] : memref<3x8x4xf32, #tpu.memory_space<vmem>>, vector<1x8x4xf32>
    %15 = vector.shape_cast %14 : vector<1x8x4xf32> to vector<8x4xf32>
    %cst_11 = arith.constant dense<0.000000e+00> : vector<8x14xf32>
    %16 = tpu.matmul %15, %13, %cst_11 {dimension_numbers = #tpu.dot_dimension_numbers<[1], [0], [0], [1], [0, 0, 1, 1], [], []>} : vector<8x4xf32>, vector<4x14xf32>, vector<8x14xf32> -> vector<8x14xf32>
    %17 = arith.addf %12, %16 : vector<8x14xf32>
    %c0_12 = arith.constant 0 : index
    %c0_13 = arith.constant 0 : index
    %18 = vector.load %arg3[%c0_12, %c0_13] : memref<8x1xf32, #tpu.memory_space<vmem>>, vector<8x1xf32>
    %19 = vector.broadcast %18 : vector<8x1xf32> to vector<8x14xf32>
    %20 = arith.mulf %17, %19 : vector<8x14xf32>
    %c0_14 = arith.constant 0 : index
    %c0_15 = arith.constant 0 : index
    %21 = vector.load %arg4[%c0_14, %c0_15] : memref<8x1xf32, #tpu.memory_space<vmem>>, vector<8x1xf32>
    %22 = vector.broadcast %21 : vector<8x1xf32> to vector<8x14xf32>
    %23 = arith.addf %20, %22 : vector<8x14xf32>
    %c0_16 = arith.constant 0 : index
    %c0_17 = arith.constant 0 : index
    %c0_18 = arith.constant 0 : index
    %24 = vector.load %arg5[%c0_16, %c0_17, %c0_18] : memref<1x8x14xf32, #tpu.memory_space<vmem>>, vector<1x8x14xf32>
    %25 = vector.shape_cast %24 : vector<1x8x14xf32> to vector<8x14xf32>
    %26 = vector.shape_cast %23 : vector<8x14xf32> to vector<1x8x14xf32>
    tpu.vector_store %arg5[%c0_16, %c0_17, %c0_18], %26 {strides = array<i32>} : memref<1x8x14xf32, #tpu.memory_space<vmem>>, vector<1x8x14xf32>,
    return
  }
  func.func @transform_0(%arg0: i32) -> (i32, i32, i32) {
    %c0_i32 = arith.constant 0 : i32
    %c0_i32_0 = arith.constant 0 : i32
    %c0_i32_1 = arith.constant 0 : i32
    return %arg0, %c0_i32, %c0_i32_0 : i32, i32, i32
  }
  func.func @transform_1(%arg0: i32) -> (i32, i32, i32) {
    %c0_i32 = arith.constant 0 : i32
    %c0_i32_0 = arith.constant 0 : i32
    %c0_i32_1 = arith.constant 0 : i32
    %c0_i32_2 = arith.constant 0 : i32
    return %c0_i32, %c0_i32_0, %c0_i32_1 : i32, i32, i32
  }
  func.func @transform_2(%arg0: i32) -> (i32, i32) {
    %c0_i32 = arith.constant 0 : i32
    %c0_i32_0 = arith.constant 0 : i32
    %c0_i32_1 = arith.constant 0 : i32
    return %c0_i32, %c0_i32_0 : i32, i32
  }
  func.func @transform_3(%arg0: i32) -> (i32, i32) {
    %c0_i32 = arith.constant 0 : i32
    %c0_i32_0 = arith.constant 0 : i32
    %c0_i32_1 = arith.constant 0 : i32
    return %c0_i32, %c0_i32_0 : i32, i32
  }
  func.func @transform_4(%arg0: i32) -> (i32, i32, i32) {
    %c0_i32 = arith.constant 0 : i32
    %c0_i32_0 = arith.constant 0 : i32
    %c0_i32_1 = arith.constant 0 : i32
    return %arg0, %c0_i32, %c0_i32_0 : i32, i32, i32
  }
}

</mosaic_0001>

<llo_original>
// kernel: relu_conv_bn.2
$region0: #{relu_conv_bn.2}
  #allocation0 [shape = 'u32[]', space=smem, size = 0x4, offset = 0x4, fixed_abs, tag = 'smem constant byte address 0x4 - core index']
  #allocation1 [shape = 'u32[144,128]{1,0:T(1,128)}', space=vmem, size = 0x12000, scoped, tag = 'internal scratch']
  %s0 = inlined_call_operand.vmem [shape: f32[2,4,16], index: 0, kind: input, shape index: {}]
  %s1 = inlined_call_operand.vmem [shape: f32[3,8,4], index: 1, kind: input, shape index: {}]
  %s2 = inlined_call_operand.vmem [shape: f32[2,8,1], index: 2, kind: output, shape index: {0}]
  %s3 = inlined_call_operand.vmem [shape: f32[2,8,1], index: 3, kind: output, shape index: {1}]
  %4 = xla_tuple %s2, %s3
  %s5 = sld [smem:[#allocation0]]
  $region49: #{relu_conv_bn.2} parent=0
    _
  %s7 = ssub.s32 1, %s5
  %s8 = scalar_select 0, %s7, %s5
  loop: start=0, step=1, limit=4
  $region2: #{relu_conv_bn.2} parent=0 // loop_pre_header
    _
  $region3: #{relu_conv_bn.2} parent=0 // loop_header
    %s10 = sphi 0, %s14
    %p11 = scmp.ge.s32.totalorder %s10, 4
    %s20 = sphi 0, %s22
    %s23 = sphi 0, %s20
    %s24 = sphi 0, %s23
    %s40 = sphi 0, %s24
    %s44 = sphi 0, %s44
    %s46 = sphi 0, %s44
    %s47 = sphi 0, %s46
    %s61 = sphi 0, %s47
    %s67 = sphi 0, %s69
    %s70 = sphi 0, %s67
    %s71 = sphi 0, %s70
    %s87 = sphi 0, %s71
    %s93 = sphi 0, %s95
    %s96 = sphi 0, %s93
    %s97 = sphi 0, %s96
    %s113 = sphi 0, %s97
  $region4: #{relu_conv_bn.2} parent=0 // loop_header_branch
    %13 = sbr.rel (%p11) target = $region8
  $region5: #{relu_conv_bn.2} parent=0 // loop_body
    %s15 = ssub.s32 %s10, 1
    %s16 = ssub.s32 %s10, 2
    %s17 = sadd.s32 %s10, 1
    %s18 = ssub.s32 %s10, %s17
    %p19 = scmp.eq.s32.totalorder %s18, 0
    %s21 = sadd.s32 %s20, 1
    %s22 = scalar_select %p19, %s20, %s21
    %p25 = pneg %p19
    %p26 = scmp.eq.s32.totalorder %s10, 1
    %p27 = por %p25, %p26
    %p28 = scmp.ne.s32.totalorder %s20, %s23
    %p29 = scmp.eq.s32.totalorder %s10, 0
    %p30 = por %p28, %p29
    %p31 = scmp.ne.s32.totalorder %s20, %s23
    %p32 = scmp.eq.s32.totalorder %s15, 1
    %p33 = por %p31, %p32
    %p34 = scmp.ne.s32.totalorder %s23, %s24
    %p35 = scmp.eq.s32.totalorder %s15, 0
    %p36 = por %p34, %p35
    %p37 = scmp.ne.s32.totalorder %s23, %s24
    %p38 = scmp.eq.s32.totalorder %s16, 1
    %p39 = por %p37, %p38
    %p41 = scmp.ne.s32.totalorder %s24, %s40
    %p42 = scmp.eq.s32.totalorder %s16, 0
    %p43 = por %p41, %p42
    %s45 = sadd.s32 %s44, 1
    %p48 = scmp.eq.s32.totalorder %s10, 1
    %p49 = scmp.ne.s32.totalorder %s44, %s46
    %p50 = scmp.eq.s32.totalorder %s10, 0
    %p51 = por %p49, %p50
    %p52 = scmp.ne.s32.totalorder %s44, %s46
    %p53 = scmp.eq.s32.totalorder %s15, 1
    %p54 = por %p52, %p53
    %p55 = scmp.ne.s32.totalorder %s46, %s47
    %p56 = scmp.eq.s32.totalorder %s15, 0
    %p57 = por %p55, %p56
    %p58 = scmp.ne.s32.totalorder %s46, %s47
    %p59 = scmp.eq.s32.totalorder %s16, 1
    %p60 = por %p58, %p59
    %p62 = scmp.ne.s32.totalorder %s47, %s61
    %p63 = scmp.eq.s32.totalorder %s16, 0
    %p64 = por %p62, %p63
    %s65 = ssub.s32 %s10, %s17
    %p66 = scmp.eq.s32.totalorder %s65, 0
    %s68 = sadd.s32 %s67, 1
    %s69 = scalar_select %p66, %s67, %s68
    %p72 = pneg %p66
    %p73 = scmp.eq.s32.totalorder %s10, 1
    %p74 = por %p72, %p73
    %p75 = scmp.ne.s32.totalorder %s67, %s70
    %p76 = scmp.eq.s32.totalorder %s10, 0
    %p77 = por %p75, %p76
    %p78 = scmp.ne.s32.totalorder %s67, %s70
    %p79 = scmp.eq.s32.totalorder %s15, 1
    %p80 = por %p78, %p79
    %p81 = scmp.ne.s32.totalorder %s70, %s71
    %p82 = scmp.eq.s32.totalorder %s15, 0
    %p83 = por %p81, %p82
    %p84 = scmp.ne.s32.totalorder %s70, %s71
    %p85 = scmp.eq.s32.totalorder %s16, 1
    %p86 = por %p84, %p85
    %p88 = scmp.ne.s32.totalorder %s71, %s87
    %p89 = scmp.eq.s32.totalorder %s16, 0
    %p90 = por %p88, %p89
    %s91 = ssub.s32 %s10, %s17
    %p92 = scmp.eq.s32.totalorder %s91, 0
    %s94 = sadd.s32 %s93, 1
    %s95 = scalar_select %p92, %s93, %s94
    %p98 = pneg %p92
    %p99 = scmp.eq.s32.totalorder %s10, 1
    %p100 = por %p98, %p99
    %p101 = scmp.ne.s32.totalorder %s93, %s96
    %p102 = scmp.eq.s32.totalorder %s10, 0
    %p103 = por %p101, %p102
    %p104 = scmp.ne.s32.totalorder %s93, %s96
    %p105 = scmp.eq.s32.totalorder %s15, 1
    %p106 = por %p104, %p105
    %p107 = scmp.ne.s32.totalorder %s96, %s97
    %p108 = scmp.eq.s32.totalorder %s15, 0
    %p109 = por %p107, %p108
    %p110 = scmp.ne.s32.totalorder %s96, %s97
    %p111 = scmp.eq.s32.totalorder %s16, 1
    %p112 = por %p110, %p111
    %p114 = scmp.ne.s32.totalorder %s97, %s113
    %p115 = scmp.eq.s32.totalorder %s16, 0
    %p116 = por %p114, %p115
    %p117 = scmp.le.s32.totalorder 1, %s10
    %p118 = scmp.lt.s32.totalorder %s10, 3
    %p119 = pnand %p117, %p118
    %p120 = pneg %p119
    // Predicated region
    $region9: #{relu_conv_bn.2} parent=5 // pred_check
      _
    $region10: #{relu_conv_bn.2} parent=5 // pred_check_branch
      %122 = sbr.rel (%p119) target = $region12
    $region11: #{relu_conv_bn.2} parent=5 // pred_region
      %s123 = ssub.s32 %s10, 1
      // Predicated region
      $region13: #{relu_conv_bn.2} parent=11 // pred_check
        %p124 = pneg %p57
      $region14: #{relu_conv_bn.2} parent=11 // pred_check_branch
        %126 = sbr.rel (%p124) target = $region16
      $region15: #{relu_conv_bn.2} parent=11 // pred_region
        _
      $region16: #{relu_conv_bn.2} parent=11 // pred_fallthru
        _
    $region12: #{relu_conv_bn.2} parent=5 // pred_fallthru
      _
    %p127 = scmp.lt.s32.totalorder %s10, 2
    // Predicated region
    $region17: #{relu_conv_bn.2} parent=5 // pred_check
      %p128 = pneg %p127
    $region18: #{relu_conv_bn.2} parent=5 // pred_check_branch
      %130 = sbr.rel (%p128) target = $region20
    $region19: #{relu_conv_bn.2} parent=5 // pred_region
      // Predicated region
      $region21: #{relu_conv_bn.2} parent=19 // pred_check
        %p131 = pneg %p30
      $region22: #{relu_conv_bn.2} parent=19 // pred_check_branch
        %133 = sbr.rel (%p131) target = $region24
      $region23: #{relu_conv_bn.2} parent=19 // pred_region
        %p134 = scmp.lt.s32.totalorder %s10, 1
        %s135 = scalar_select %p134, %s10, 1
        %s136 = smul.addr %s135, 4
        %s137 = scalar_lea.vmem %s0, %s136
      $region24: #{relu_conv_bn.2} parent=19 // pred_fallthru
        _
    $region20: #{relu_conv_bn.2} parent=5 // pred_fallthru
      _
    %p138 = scmp.le.s32.totalorder 1, %s10
    %p139 = scmp.lt.s32.totalorder %s10, 3
    %p140 = pnand %p138, %p139
    %p141 = pneg %p140
    // Predicated region
    $region25: #{relu_conv_bn.2} parent=5 // pred_check
      _
    $region26: #{relu_conv_bn.2} parent=5 // pred_check_branch
      %143 = sbr.rel (%p140) target = $region28
    $region27: #{relu_conv_bn.2} parent=5 // pred_region
      %s144 = ssub.s32 %s10, 1
      %p145 = scmp.lt.s32.totalorder %s15, 1
      %s146 = scalar_select %p145, %s15, 1
      %s147 = smul.addr %s146, 4
      %s148 = scalar_lea.vmem %s0, %s147
      %p149 = pneg %p36
      %p150 = pneg %p33
      %p151 = pneg %p57
      %p152 = pneg %p54
      %p153 = pneg %p83
      %p154 = pneg %p80
      %p155 = scmp.lt.s32.totalorder %s15, 1
      %s156 = scalar_select %p155, %s15, 1
      %s157 = smul.addr %s156, 8
      %s158 = scalar_lea.vmem %s2, %s157
      %p159 = pneg %p109
      %p160 = pneg %p106
      %p161 = scmp.lt.s32.totalorder %s15, 1
      %s162 = scalar_select %p161, %s15, 1
      %s163 = smul.addr %s162, 8
      %s164 = scalar_lea.vmem %s3, %s163
      %p165 = scmp.lt.s32.totalorder %s15, 1
      %s166 = scalar_select %p165, %s15, 1
      %s167 = smul.addr %s166, 4
      %s168 = scalar_lea.vmem %s0, %s167
      %p169 = scmp.lt.s32.totalorder %s15, 1
      %s170 = scalar_select %p169, %s15, 1
      %s171 = smul.addr %s170, 8
      %s172 = scalar_lea.vmem %s2, %s171
      %p173 = scmp.lt.s32.totalorder %s15, 1
      %s174 = scalar_select %p173, %s15, 1
      %s175 = smul.addr %s174, 8
      %s176 = scalar_lea.vmem %s3, %s175
      %v177 = vld [vmem:[%s168] sm:$0xf]
      %v178 = vmax.f32 %v177, 0.0
      %v179 = vld [vmem:[%s1] sm:$0xff]
      %s180 = scalar_lea.vmem %s1, 8
      %v181 = vld [vmem:[%s180] sm:$0xff]
      %183 = vrot.lane.b32.xlu0 %v178, 127
      %v184 = vpop.permute.xlu0 %183
      %vm185 = vcmask 31744
      %v187 = vsel %vm185, %v181, 0
      %vm189 = vcmask 1043456
      %v190 = vsel %vm189, %v184, 0
      %192 = vmatprep.subr.mxu0 0.0
      %193 = vmatpush1.msra.mxu0 %v190
      %194 = vmatprep.subr.mxu0 0.0
      %195 = vmatpush1.msra.mxu0 0.0
      %196 = vmatprep.subr.mxu0 0.0
      %197 = vmatpush1.msra.mxu0 0.0
      %198 = vmatprep.subr.mxu0 0.0
      %199 = vmatpush1.msra.mxu0 0.0
      %200 = vmatprep.subr.mxu0 0.0
      %201 = vmatpush1.msra.mxu0 0.0
      %202 = vmatprep.subr.mxu0 0.0
      %203 = vmatpush1.msra.mxu0 0.0
      %204 = vmatprep.subr.mxu0 0.0
      %205 = vmatpush1.msra.mxu0 0.0
      %206 = vmatprep.subr.mxu0 0.0
      %207 = vmatpush1.msra.mxu0 0.0
      %208 = vmatprep.subr.mxu0 0.0
      %209 = vmatpush1.msra.mxu0 0.0
      %210 = vmatprep.subr.mxu0 0.0
      %211 = vmatpush1.msra.mxu0 0.0
      %212 = vmatprep.subr.mxu0 0.0
      %213 = vmatpush1.msra.mxu0 0.0
      %214 = vmatprep.subr.mxu0 0.0
      %215 = vmatpush1.msra.mxu0 0.0
      %216 = vmatprep.subr.mxu0 0.0
      %217 = vmatpush1.msra.mxu0 0.0
      %218 = vmatprep.subr.mxu0 0.0
      %219 = vmatpush1.msra.mxu0 0.0
      %220 = vmatprep.subr.mxu0 0.0
      %221 = vmatpush1.msra.mxu0 0.0
      %222 = vmatprep.subr.mxu0 0.0
      %223 = vmatpush1.msra.mxu0 0.0
      %224 = vmatprep.subr.mxu0 0.0
      %225 = vmatpush1.msra.mxu0 0.0
      %226 = vmatprep.subr.mxu0 0.0
      %227 = vmatpush1.msra.mxu0 0.0
      %228 = vmatprep.subr.mxu0 0.0
      %229 = vmatpush1.msra.mxu0 0.0
      %230 = vmatprep.subr.mxu0 0.0
      %231 = vmatpush1.msra.mxu0 0.0
      %232 = vmatprep.subr.mxu0 0.0
      %233 = vmatpush1.msra.mxu0 0.0
      %234 = vmatprep.subr.mxu0 0.0
      %235 = vmatpush1.msra.mxu0 0.0
      %236 = vmatprep.subr.mxu0 0.0
      %237 = vmatpush1.msra.mxu0 0.0
      %238 = vmatprep.subr.mxu0 0.0
      %239 = vmatpush1.msra.mxu0 0.0
      %240 = vmatprep.subr.mxu0 0.0
      %241 = vmatpush1.msra.mxu0 0.0
      %242 = vmatprep.subr.mxu0 0.0
      %243 = vmatpush1.msra.mxu0 0.0
      %244 = vmatprep.subr.mxu0 0.0
      %245 = vmatpush1.msra.mxu0 0.0
      %246 = vmatprep.subr.mxu0 0.0
      %247 = vmatpush1.msra.mxu0 0.0
      %248 = vmatprep.subr.mxu0 0.0
      %249 = vmatpush1.msra.mxu0 0.0
      %250 = vmatprep.subr.mxu0 0.0
      %251 = vmatpush1.msra.mxu0 0.0
      %252 = vmatprep.subr.mxu0 0.0
      %253 = vmatpush1.msra.mxu0 0.0
      %254 = vmatprep.subr.mxu0 0.0
      %255 = vmatpush1.msra.mxu0 0.0
      %256 = vmatprep.mubr.f32.mxu0 0.0
      %257 = vmatmul.mubr.f32.gmra.mrb[0].mxu0 %v187
      %v258 = vpop.f32.mrb[0].mxu0
      %v259 = vadd.f32 0.0, %v258
      %v260 = vpop.f32.mrb[0].mxu0
      %261 = vdwg.mxu0
      %v263 = vsel %vm185, %v179, 0
      %v265 = vsel %vm189, %v178, 0
      %267 = vmatprep.subr.mxu0 0.0
      %268 = vmatpush1.msra.mxu0 %v265
      %269 = vmatprep.subr.mxu0 0.0
      %270 = vmatpush1.msra.mxu0 0.0
      %271 = vmatprep.subr.mxu0 0.0
      %272 = vmatpush1.msra.mxu0 0.0
      %273 = vmatprep.subr.mxu0 0.0
      %274 = vmatpush1.msra.mxu0 0.0
      %275 = vmatprep.subr.mxu0 0.0
      %276 = vmatpush1.msra.mxu0 0.0
      %277 = vmatprep.subr.mxu0 0.0
      %278 = vmatpush1.msra.mxu0 0.0
      %279 = vmatprep.subr.mxu0 0.0
      %280 = vmatpush1.msra.mxu0 0.0
      %281 = vmatprep.subr.mxu0 0.0
      %282 = vmatpush1.msra.mxu0 0.0
      %283 = vmatprep.subr.mxu0 0.0
      %284 = vmatpush1.msra.mxu0 0.0
      %285 = vmatprep.subr.mxu0 0.0
      %286 = vmatpush1.msra.mxu0 0.0
      %287 = vmatprep.subr.mxu0 0.0
      %288 = vmatpush1.msra.mxu0 0.0
      %289 = vmatprep.subr.mxu0 0.0
      %290 = vmatpush1.msra.mxu0 0.0
      %291 = vmatprep.subr.mxu0 0.0
      %292 = vmatpush1.msra.mxu0 0.0
      %293 = vmatprep.subr.mxu0 0.0
      %294 = vmatpush1.msra.mxu0 0.0
      %295 = vmatprep.subr.mxu0 0.0
      %296 = vmatpush1.msra.mxu0 0.0
      %297 = vmatprep.subr.mxu0 0.0
      %298 = vmatpush1.msra.mxu0 0.0
      %299 = vmatprep.subr.mxu0 0.0
      %300 = vmatpush1.msra.mxu0 0.0
      %301 = vmatprep.subr.mxu0 0.0
      %302 = vmatpush1.msra.mxu0 0.0
      %303 = vmatprep.subr.mxu0 0.0
      %304 = vmatpush1.msra.mxu0 0.0
      %305 = vmatprep.subr.mxu0 0.0
      %306 = vmatpush1.msra.mxu0 0.0
      %307 = vmatprep.subr.mxu0 0.0
      %308 = vmatpush1.msra.mxu0 0.0
      %309 = vmatprep.subr.mxu0 0.0
      %310 = vmatpush1.msra.mxu0 0.0
      %311 = vmatprep.subr.mxu0 0.0
      %312 = vmatpush1.msra.mxu0 0.0
      %313 = vmatprep.subr.mxu0 0.0
      %314 = vmatpush1.msra.mxu0 0.0
      %315 = vmatprep.subr.mxu0 0.0
      %316 = vmatpush1.msra.mxu0 0.0
      %317 = vmatprep.subr.mxu0 0.0
      %318 = vmatpush1.msra.mxu0 0.0
      %319 = vmatprep.subr.mxu0 0.0
      %320 = vmatpush1.msra.mxu0 0.0
      %321 = vmatprep.subr.mxu0 0.0
      %322 = vmatpush1.msra.mxu0 0.0
      %323 = vmatprep.subr.mxu0 0.0
      %324 = vmatpush1.msra.mxu0 0.0
      %325 = vmatprep.subr.mxu0 0.0
      %326 = vmatpush1.msra.mxu0 0.0
      %327 = vmatprep.subr.mxu0 0.0
      %328 = vmatpush1.msra.mxu0 0.0
      %329 = vmatprep.subr.mxu0 0.0
      %330 = vmatpush1.msra.mxu0 0.0
      %331 = vmatprep.mubr.f32.mxu0 0.0
      %332 = vmatmul.mubr.f32.gmra.mrb[0].mxu0 %v263
      %v333 = vpop.f32.mrb[0].mxu0
      %v334 = vadd.f32 %v259, %v333
      %v335 = vpop.f32.mrb[0].mxu0
      %336 = vdwg.mxu0
      %s337 = scalar_lea.vmem %s1, 16
      %v338 = vld [vmem:[%s337] sm:$0xff]
      %339 = vrot.lane.b32.xlu0 %v178, 126
      %v340 = vpop.permute.xlu0 %339
      %v342 = vsel %vm185, %v338, 0
      %v344 = vsel %vm189, %v340, 0
      %346 = vmatprep.subr.mxu0 0.0
      %347 = vmatpush1.msra.mxu0 %v344
      %348 = vmatprep.subr.mxu0 0.0
      %349 = vmatpush1.msra.mxu0 0.0
      %350 = vmatprep.subr.mxu0 0.0
      %351 = vmatpush1.msra.mxu0 0.0
      %352 = vmatprep.subr.mxu0 0.0
      %353 = vmatpush1.msra.mxu0 0.0
      %354 = vmatprep.subr.mxu0 0.0
      %355 = vmatpush1.msra.mxu0 0.0
      %356 = vmatprep.subr.mxu0 0.0
      %357 = vmatpush1.msra.mxu0 0.0
      %358 = vmatprep.subr.mxu0 0.0
      %359 = vmatpush1.msra.mxu0 0.0
      %360 = vmatprep.subr.mxu0 0.0
      %361 = vmatpush1.msra.mxu0 0.0
      %362 = vmatprep.subr.mxu0 0.0
      %363 = vmatpush1.msra.mxu0 0.0
      %364 = vmatprep.subr.mxu0 0.0
      %365 = vmatpush1.msra.mxu0 0.0
      %366 = vmatprep.subr.mxu0 0.0
      %367 = vmatpush1.msra.mxu0 0.0
      %368 = vmatprep.subr.mxu0 0.0
      %369 = vmatpush1.msra.mxu0 0.0
      %370 = vmatprep.subr.mxu0 0.0
      %371 = vmatpush1.msra.mxu0 0.0
      %372 = vmatprep.subr.mxu0 0.0
      %373 = vmatpush1.msra.mxu0 0.0
      %374 = vmatprep.subr.mxu0 0.0
      %375 = vmatpush1.msra.mxu0 0.0
      %376 = vmatprep.subr.mxu0 0.0
      %377 = vmatpush1.msra.mxu0 0.0
      %378 = vmatprep.subr.mxu0 0.0
      %379 = vmatpush1.msra.mxu0 0.0
      %380 = vmatprep.subr.mxu0 0.0
      %381 = vmatpush1.msra.mxu0 0.0
      %382 = vmatprep.subr.mxu0 0.0
      %383 = vmatpush1.msra.mxu0 0.0
      %384 = vmatprep.subr.mxu0 0.0
      %385 = vmatpush1.msra.mxu0 0.0
      %386 = vmatprep.subr.mxu0 0.0
      %387 = vmatpush1.msra.mxu0 0.0
      %388 = vmatprep.subr.mxu0 0.0
      %389 = vmatpush1.msra.mxu0 0.0
      %390 = vmatprep.subr.mxu0 0.0
      %391 = vmatpush1.msra.mxu0 0.0
      %392 = vmatprep.subr.mxu0 0.0
      %393 = vmatpush1.msra.mxu0 0.0
      %394 = vmatprep.subr.mxu0 0.0
      %395 = vmatpush1.msra.mxu0 0.0
      %396 = vmatprep.subr.mxu0 0.0
      %397 = vmatpush1.msra.mxu0 0.0
      %398 = vmatprep.subr.mxu0 0.0
      %399 = vmatpush1.msra.mxu0 0.0
      %400 = vmatprep.subr.mxu0 0.0
      %401 = vmatpush1.msra.mxu0 0.0
      %402 = vmatprep.subr.mxu0 0.0
      %403 = vmatpush1.msra.mxu0 0.0
      %404 = vmatprep.subr.mxu0 0.0
      %405 = vmatpush1.msra.mxu0 0.0
      %406 = vmatprep.subr.mxu0 0.0
      %407 = vmatpush1.msra.mxu0 0.0
      %408 = vmatprep.subr.mxu0 0.0
      %409 = vmatpush1.msra.mxu0 0.0
      %410 = vmatprep.mubr.f32.mxu0 0.0
      %411 = vmatmul.mubr.f32.gmra.mrb[0].mxu0 %v342
      %v412 = vpop.f32.mrb[0].mxu0
      %v413 = vadd.f32 0.0, %v412
      %v414 = vpop.f32.mrb[0].mxu0
      %415 = vdwg.mxu0
      %v416 = vadd.f32 %v334, %v413
      %vm417 = vcmask 113664
      %v418 = vsel %vm417, %v416, 0.0
      %419 = vadd.xlane.f32.xlu0 %v418
      %v420 = vpop.xlane.xlu0 %419
      %v421 = vmul.f32 %v420, 0.071428575
      %vm422 = vcmask 7168
      %423 = vst.msk [vmem:[%s172] sm:$0xff] %vm422, %v420
      %v424 = vsub.f32 %v416, %v421
      %v425 = vmul.f32 %v424, %v424
      %v426 = vsel %vm417, %v425, 0.0
      %427 = vadd.xlane.f32.xlu0 %v426
      %v428 = vpop.xlane.xlu0 %427
      %429 = vst.msk [vmem:[%s176] sm:$0xff] %vm422, %v428
      %p430 = scmp.lt.s32.totalorder %s15, 1
      %s431 = scalar_select %p430, %s15, 1
      %s432 = smul.addr %s431, 8
      %s433 = scalar_lea.vmem %s2, %s432
      %p434 = scmp.lt.s32.totalorder %s15, 1
      %s435 = scalar_select %p434, %s15, 1
      %s436 = smul.addr %s435, 8
      %s437 = scalar_lea.vmem %s3, %s436
      // Predicated region
      $region29: #{relu_conv_bn.2} parent=27 // pred_check
        %p438 = pneg %p80
      $region30: #{relu_conv_bn.2} parent=27 // pred_check_branch
        %440 = sbr.rel (%p438) target = $region32
      $region31: #{relu_conv_bn.2} parent=27 // pred_region
        _
      $region32: #{relu_conv_bn.2} parent=27 // pred_fallthru
        _
      // Predicated region
      $region33: #{relu_conv_bn.2} parent=27 // pred_check
        %p441 = pneg %p106
      $region34: #{relu_conv_bn.2} parent=27 // pred_check_branch
        %443 = sbr.rel (%p441) target = $region36
      $region35: #{relu_conv_bn.2} parent=27 // pred_region
        _
      $region36: #{relu_conv_bn.2} parent=27 // pred_fallthru
        _
    $region28: #{relu_conv_bn.2} parent=5 // pred_fallthru
      _
    %p444 = scmp.le.s32.totalorder 2, %s10
    // Predicated region
    $region37: #{relu_conv_bn.2} parent=5 // pred_check
      %p445 = pneg %p444
    $region38: #{relu_conv_bn.2} parent=5 // pred_check_branch
      %447 = sbr.rel (%p445) target = $region40
    $region39: #{relu_conv_bn.2} parent=5 // pred_region
      %s448 = ssub.s32 %s10, 2
      // Predicated region
      $region41: #{relu_conv_bn.2} parent=39 // pred_check
        %p449 = pneg %p86
      $region42: #{relu_conv_bn.2} parent=39 // pred_check_branch
        %451 = sbr.rel (%p449) target = $region44
      $region43: #{relu_conv_bn.2} parent=39 // pred_region
        %p452 = scmp.lt.s32.totalorder %s16, 1
        %s453 = scalar_select %p452, %s16, 1
        %s454 = smul.addr %s453, 8
        %s455 = scalar_lea.vmem %s2, %s454
      $region44: #{relu_conv_bn.2} parent=39 // pred_fallthru
        _
      // Predicated region
      $region45: #{relu_conv_bn.2} parent=39 // pred_check
        %p456 = pneg %p112
      $region46: #{relu_conv_bn.2} parent=39 // pred_check_branch
        %458 = sbr.rel (%p456) target = $region48
      $region47: #{relu_conv_bn.2} parent=39 // pred_region
        %p459 = scmp.lt.s32.totalorder %s16, 1
        %s460 = scalar_select %p459, %s16, 1
        %s461 = smul.addr %s460, 8
        %s462 = scalar_lea.vmem %s3, %s461
      $region48: #{relu_conv_bn.2} parent=39 // pred_fallthru
        _
    $region40: #{relu_conv_bn.2} parent=5 // pred_fallthru
      _
  $region6: #{relu_conv_bn.2} parent=0 // loop_footer
    %s14 = sadd.s32 1, %s10
  $region7: #{relu_conv_bn.2} parent=0 // loop_footer_branch
    %9 = sbr.rel target = $region3
  $region8: #{relu_conv_bn.2} parent=0 // loop_exit
    _

// kernel: relu_conv_bn.3
$region0: #{relu_conv_bn.3}
  #allocation0 [shape = 'u32[]', space=smem, size = 0x4, offset = 0x4, fixed_abs, tag = 'smem constant byte address 0x4 - core index']
  #allocation1 [shape = 'u32[144,128]{1,0:T(1,128)}', space=vmem, size = 0x12000, scoped, tag = 'internal scratch']
  %s0 = inlined_call_operand.vmem [shape: f32[2,4,16], index: 0, kind: input, shape index: {}]
  %s1 = inlined_call_operand.vmem [shape: f32[3,8,4], index: 1, kind: input, shape index: {}]
  %s2 = inlined_call_operand.vmem [shape: f32[8,1], index: 2, kind: input, shape index: {}]
  %s3 = inlined_call_operand.vmem [shape: f32[8,1], index: 3, kind: input, shape index: {}]
  %s4 = inlined_call_operand.hbm [shape: f32[2,8,14], index: 4, kind: output, shape index: {}]
  %s5 = sld [smem:[#allocation0]]
  $region49: #{relu_conv_bn.3} parent=0
    _
  %s7 = ssub.s32 1, %s5
  %s8 = scalar_select 0, %s7, %s5
  $region1: #{relu_conv_bn.3} parent=0
    #allocation2 [shape = 'u8[8192]{0}', space=vmem, size = 0x2000, scoped, tag = 'output window, operand 0']
    #allocation3 [shape = 's32[2]{0}', space=sflag, size = 0x8, scoped, tag = 'scoped memory for relu_conv_bn.3']
    %9 = vsyncpa [#allocation3], 0
    %s10 = scalar_lea.sflag [#allocation3], 1
    %11 = vsyncpa %s10, 0
    loop: start=0, step=1, limit=4
    $region2: #{relu_conv_bn.3} parent=1 // loop_pre_header
      _
    $region3: #{relu_conv_bn.3} parent=1 // loop_header
      %s13 = sphi 0, %s17
      %p14 = scmp.ge.s32.totalorder %s13, 4
      %s23 = sphi 0, %s25
      %s26 = sphi 0, %s23
      %s27 = sphi 0, %s26
      %s43 = sphi 0, %s27
      %s47 = sphi 0, %s47
      %s49 = sphi 0, %s47
      %s50 = sphi 0, %s49
      %s64 = sphi 0, %s50
      %s68 = sphi 0, %s68
      %s70 = sphi 0, %s68
      %s71 = sphi 0, %s70
      %s85 = sphi 0, %s71
      %s89 = sphi 0, %s89
      %s91 = sphi 0, %s89
      %s92 = sphi 0, %s91
      %s106 = sphi 0, %s92
      %s112 = sphi 0, %s114
      %s115 = sphi 0, %s112
      %s116 = sphi 0, %s115
      %s132 = sphi 0, %s116
    $region4: #{relu_conv_bn.3} parent=1 // loop_header_branch
      %16 = sbr.rel (%p14) target = $region8
    $region5: #{relu_conv_bn.3} parent=1 // loop_body
      %s18 = ssub.s32 %s13, 1
      %s19 = ssub.s32 %s13, 2
      %s20 = sadd.s32 %s13, 1
      %s21 = ssub.s32 %s13, %s20
      %p22 = scmp.eq.s32.totalorder %s21, 0
      %s24 = sadd.s32 %s23, 1
      %s25 = scalar_select %p22, %s23, %s24
      %p28 = pneg %p22
      %p29 = scmp.eq.s32.totalorder %s13, 1
      %p30 = por %p28, %p29
      %p31 = scmp.ne.s32.totalorder %s23, %s26
      %p32 = scmp.eq.s32.totalorder %s13, 0
      %p33 = por %p31, %p32
      %p34 = scmp.ne.s32.totalorder %s23, %s26
      %p35 = scmp.eq.s32.totalorder %s18, 1
      %p36 = por %p34, %p35
      %p37 = scmp.ne.s32.totalorder %s26, %s27
      %p38 = scmp.eq.s32.totalorder %s18, 0
      %p39 = por %p37, %p38
      %p40 = scmp.ne.s32.totalorder %s26, %s27
      %p41 = scmp.eq.s32.totalorder %s19, 1
      %p42 = por %p40, %p41
      %p44 = scmp.ne.s32.totalorder %s27, %s43
      %p45 = scmp.eq.s32.totalorder %s19, 0
      %p46 = por %p44, %p45
      %s48 = sadd.s32 %s47, 1
      %p51 = scmp.eq.s32.totalorder %s13, 1
      %p52 = scmp.ne.s32.totalorder %s47, %s49
      %p53 = scmp.eq.s32.totalorder %s13, 0
      %p54 = por %p52, %p53
      %p55 = scmp.ne.s32.totalorder %s47, %s49
      %p56 = scmp.eq.s32.totalorder %s18, 1
      %p57 = por %p55, %p56
      %p58 = scmp.ne.s32.totalorder %s49, %s50
      %p59 = scmp.eq.s32.totalorder %s18, 0
      %p60 = por %p58, %p59
      %p61 = scmp.ne.s32.totalorder %s49, %s50
      %p62 = scmp.eq.s32.totalorder %s19, 1
      %p63 = por %p61, %p62
      %p65 = scmp.ne.s32.totalorder %s50, %s64
      %p66 = scmp.eq.s32.totalorder %s19, 0
      %p67 = por %p65, %p66
      %s69 = sadd.s32 %s68, 1
      %p72 = scmp.eq.s32.totalorder %s13, 1
      %p73 = scmp.ne.s32.totalorder %s68, %s70
      %p74 = scmp.eq.s32.totalorder %s13, 0
      %p75 = por %p73, %p74
      %p76 = scmp.ne.s32.totalorder %s68, %s70
      %p77 = scmp.eq.s32.totalorder %s18, 1
      %p78 = por %p76, %p77
      %p79 = scmp.ne.s32.totalorder %s70, %s71
      %p80 = scmp.eq.s32.totalorder %s18, 0
      %p81 = por %p79, %p80
      %p82 = scmp.ne.s32.totalorder %s70, %s71
      %p83 = scmp.eq.s32.totalorder %s19, 1
      %p84 = por %p82, %p83
      %p86 = scmp.ne.s32.totalorder %s71, %s85
      %p87 = scmp.eq.s32.totalorder %s19, 0
      %p88 = por %p86, %p87
      %s90 = sadd.s32 %s89, 1
      %p93 = scmp.eq.s32.totalorder %s13, 1
      %p94 = scmp.ne.s32.totalorder %s89, %s91
      %p95 = scmp.eq.s32.totalorder %s13, 0
      %p96 = por %p94, %p95
      %p97 = scmp.ne.s32.totalorder %s89, %s91
      %p98 = scmp.eq.s32.totalorder %s18, 1
      %p99 = por %p97, %p98
      %p100 = scmp.ne.s32.totalorder %s91, %s92
      %p101 = scmp.eq.s32.totalorder %s18, 0
      %p102 = por %p100, %p101
      %p103 = scmp.ne.s32.totalorder %s91, %s92
      %p104 = scmp.eq.s32.totalorder %s19, 1
      %p105 = por %p103, %p104
      %p107 = scmp.ne.s32.totalorder %s92, %s106
      %p108 = scmp.eq.s32.totalorder %s19, 0
      %p109 = por %p107, %p108
      %s110 = ssub.s32 %s13, %s20
      %p111 = scmp.eq.s32.totalorder %s110, 0
      %s113 = sadd.s32 %s112, 1
      %s114 = scalar_select %p111, %s112, %s113
      %p117 = pneg %p111
      %p118 = scmp.eq.s32.totalorder %s13, 1
      %p119 = por %p117, %p118
      %p120 = scmp.ne.s32.totalorder %s112, %s115
      %p121 = scmp.eq.s32.totalorder %s13, 0
      %p122 = por %p120, %p121
      %p123 = scmp.ne.s32.totalorder %s112, %s115
      %p124 = scmp.eq.s32.totalorder %s18, 1
      %p125 = por %p123, %p124
      %p126 = scmp.ne.s32.totalorder %s115, %s116
      %p127 = scmp.eq.s32.totalorder %s18, 0
      %p128 = por %p126, %p127
      %p129 = scmp.ne.s32.totalorder %s115, %s116
      %p130 = scmp.eq.s32.totalorder %s19, 1
      %p131 = por %p129, %p130
      %p133 = scmp.ne.s32.totalorder %s116, %s132
      %p134 = scmp.eq.s32.totalorder %s19, 0
      %p135 = por %p133, %p134
      %p136 = scmp.le.s32.totalorder 1, %s13
      %p137 = scmp.lt.s32.totalorder %s13, 3
      %p138 = pnand %p136, %p137
      %p139 = pneg %p138
      // Predicated region
      $region9: #{relu_conv_bn.3} parent=5 // pred_check
        _
      $region10: #{relu_conv_bn.3} parent=5 // pred_check_branch
        %141 = sbr.rel (%p138) target = $region12
      $region11: #{relu_conv_bn.3} parent=5 // pred_region
        %s142 = ssub.s32 %s13, 1
        // Predicated region
        $region13: #{relu_conv_bn.3} parent=11 // pred_check
          %p143 = pneg %p60
        $region14: #{relu_conv_bn.3} parent=11 // pred_check_branch
          %145 = sbr.rel (%p143) target = $region16
        $region15: #{relu_conv_bn.3} parent=11 // pred_region
          _
        $region16: #{relu_conv_bn.3} parent=11 // pred_fallthru
          _
        // Predicated region
        $region17: #{relu_conv_bn.3} parent=11 // pred_check
          %p146 = pneg %p81
        $region18: #{relu_conv_bn.3} parent=11 // pred_check_branch
          %148 = sbr.rel (%p146) target = $region20
        $region19: #{relu_conv_bn.3} parent=11 // pred_region
          _
        $region20: #{relu_conv_bn.3} parent=11 // pred_fallthru
          _
        // Predicated region
        $region21: #{relu_conv_bn.3} parent=11 // pred_check
          %p149 = pneg %p102
        $region22: #{relu_conv_bn.3} parent=11 // pred_check_branch
          %151 = sbr.rel (%p149) target = $region24
        $region23: #{relu_conv_bn.3} parent=11 // pred_region
          _
        $region24: #{relu_conv_bn.3} parent=11 // pred_fallthru
          _
      $region12: #{relu_conv_bn.3} parent=5 // pred_fallthru
        _
      %p152 = scmp.lt.s32.totalorder %s13, 2
      // Predicated region
      $region25: #{relu_conv_bn.3} parent=5 // pred_check
        %p153 = pneg %p152
      $region26: #{relu_conv_bn.3} parent=5 // pred_check_branch
        %155 = sbr.rel (%p153) target = $region28
      $region27: #{relu_conv_bn.3} parent=5 // pred_region
        // Predicated region
        $region29: #{relu_conv_bn.3} parent=27 // pred_check
          %p156 = pneg %p33
        $region30: #{relu_conv_bn.3} parent=27 // pred_check_branch
          %158 = sbr.rel (%p156) target = $region32
        $region31: #{relu_conv_bn.3} parent=27 // pred_region
          %p159 = scmp.lt.s32.totalorder %s13, 1
          %s160 = scalar_select %p159, %s13, 1
          %s161 = smul.addr %s160, 4
          %s162 = scalar_lea.vmem %s0, %s161
        $region32: #{relu_conv_bn.3} parent=27 // pred_fallthru
          _
      $region28: #{relu_conv_bn.3} parent=5 // pred_fallthru
        _
      %p163 = scmp.le.s32.totalorder 1, %s13
      %p164 = scmp.lt.s32.totalorder %s13, 3
      %p165 = pnand %p163, %p164
      %p166 = pneg %p165
      // Predicated region
      $region33: #{relu_conv_bn.3} parent=5 // pred_check
        _
      $region34: #{relu_conv_bn.3} parent=5 // pred_check_branch
        %168 = sbr.rel (%p165) target = $region36
      $region35: #{relu_conv_bn.3} parent=5 // pred_region
        %s169 = ssub.s32 %s13, 1
        %p170 = scmp.lt.s32.totalorder %s18, 1
        %s171 = scalar_select %p170, %s18, 1
        %s172 = smul.addr %s171, 4
        %s173 = scalar_lea.vmem %s0, %s172
        %p174 = pneg %p39
        %p175 = pneg %p36
        %p176 = pneg %p60
        %p177 = pneg %p57
        %p178 = pneg %p81
        %p179 = pneg %p78
        %p180 = pneg %p102
        %p181 = pneg %p99
        %p182 = pneg %p128
        %p183 = pneg %p125
        %s184 = sand.u32 %s115, 1
        %s185 = scalar_lea.sflag [#allocation3], %s184
        %s186 = sand.u32 %s115, 1
        %s187 = smul.addr %s186, 8
        %s188 = scalar_lea.vmem [#allocation2], %s187
        %p189 = scmp.lt.s32.totalorder %s18, 1
        %s190 = scalar_select %p189, %s18, 1
        %s191 = smul.addr %s190, 4
        %s192 = scalar_lea.vmem %s0, %s191
        %v193 = vld [vmem:[%s192] sm:$0xf]
        %v194 = vmax.f32 %v193, 0.0
        %v195 = vld [vmem:[%s1] sm:$0xff]
        %s196 = scalar_lea.vmem %s1, 8
        %v197 = vld [vmem:[%s196] sm:$0xff]
        %199 = vrot.lane.b32.xlu0 %v194, 127
        %v200 = vpop.permute.xlu0 %199
        %vm201 = vcmask 31744
        %v203 = vsel %vm201, %v197, 0
        %vm205 = vcmask 1043456
        %v206 = vsel %vm205, %v200, 0
        %208 = vmatprep.subr.mxu0 0.0
        %209 = vmatpush1.msra.mxu0 %v206
        %210 = vmatprep.subr.mxu0 0.0
        %211 = vmatpush1.msra.mxu0 0.0
        %212 = vmatprep.subr.mxu0 0.0
        %213 = vmatpush1.msra.mxu0 0.0
        %214 = vmatprep.subr.mxu0 0.0
        %215 = vmatpush1.msra.mxu0 0.0
        %216 = vmatprep.subr.mxu0 0.0
        %217 = vmatpush1.msra.mxu0 0.0
        %218 = vmatprep.subr.mxu0 0.0
        %219 = vmatpush1.msra.mxu0 0.0
        %220 = vmatprep.subr.mxu0 0.0
        %221 = vmatpush1.msra.mxu0 0.0
        %222 = vmatprep.subr.mxu0 0.0
        %223 = vmatpush1.msra.mxu0 0.0
        %224 = vmatprep.subr.mxu0 0.0
        %225 = vmatpush1.msra.mxu0 0.0
        %226 = vmatprep.subr.mxu0 0.0
        %227 = vmatpush1.msra.mxu0 0.0
        %228 = vmatprep.subr.mxu0 0.0
        %229 = vmatpush1.msra.mxu0 0.0
        %230 = vmatprep.subr.mxu0 0.0
        %231 = vmatpush1.msra.mxu0 0.0
        %232 = vmatprep.subr.mxu0 0.0
        %233 = vmatpush1.msra.mxu0 0.0
        %234 = vmatprep.subr.mxu0 0.0
        %235 = vmatpush1.msra.mxu0 0.0
        %236 = vmatprep.subr.mxu0 0.0
        %237 = vmatpush1.msra.mxu0 0.0
        %238 = vmatprep.subr.mxu0 0.0
        %239 = vmatpush1.msra.mxu0 0.0
        %240 = vmatprep.subr.mxu0 0.0
        %241 = vmatpush1.msra.mxu0 0.0
        %242 = vmatprep.subr.mxu0 0.0
        %243 = vmatpush1.msra.mxu0 0.0
        %244 = vmatprep.subr.mxu0 0.0
        %245 = vmatpush1.msra.mxu0 0.0
        %246 = vmatprep.subr.mxu0 0.0
        %247 = vmatpush1.msra.mxu0 0.0
        %248 = vmatprep.subr.mxu0 0.0
        %249 = vmatpush1.msra.mxu0 0.0
        %250 = vmatprep.subr.mxu0 0.0
        %251 = vmatpush1.msra.mxu0 0.0
        %252 = vmatprep.subr.mxu0 0.0
        %253 = vmatpush1.msra.mxu0 0.0
        %254 = vmatprep.subr.mxu0 0.0
        %255 = vmatpush1.msra.mxu0 0.0
        %256 = vmatprep.subr.mxu0 0.0
        %257 = vmatpush1.msra.mxu0 0.0
        %258 = vmatprep.subr.mxu0 0.0
        %259 = vmatpush1.msra.mxu0 0.0
        %260 = vmatprep.subr.mxu0 0.0
        %261 = vmatpush1.msra.mxu0 0.0
        %262 = vmatprep.subr.mxu0 0.0
        %263 = vmatpush1.msra.mxu0 0.0
        %264 = vmatprep.subr.mxu0 0.0
        %265 = vmatpush1.msra.mxu0 0.0
        %266 = vmatprep.subr.mxu0 0.0
        %267 = vmatpush1.msra.mxu0 0.0
        %268 = vmatprep.subr.mxu0 0.0
        %269 = vmatpush1.msra.mxu0 0.0
        %270 = vmatprep.subr.mxu0 0.0
        %271 = vmatpush1.msra.mxu0 0.0
        %272 = vmatprep.mubr.f32.mxu0 0.0
        %273 = vmatmul.mubr.f32.gmra.mrb[0].mxu0 %v203
        %v274 = vpop.f32.mrb[0].mxu0
        %v275 = vadd.f32 0.0, %v274
        %v276 = vpop.f32.mrb[0].mxu0
        %277 = vdwg.mxu0
        %v279 = vsel %vm201, %v195, 0
        %v281 = vsel %vm205, %v194, 0
        %283 = vmatprep.subr.mxu0 0.0
        %284 = vmatpush1.msra.mxu0 %v281
        %285 = vmatprep.subr.mxu0 0.0
        %286 = vmatpush1.msra.mxu0 0.0
        %287 = vmatprep.subr.mxu0 0.0
        %288 = vmatpush1.msra.mxu0 0.0
        %289 = vmatprep.subr.mxu0 0.0
        %290 = vmatpush1.msra.mxu0 0.0
        %291 = vmatprep.subr.mxu0 0.0
        %292 = vmatpush1.msra.mxu0 0.0
        %293 = vmatprep.subr.mxu0 0.0
        %294 = vmatpush1.msra.mxu0 0.0
        %295 = vmatprep.subr.mxu0 0.0
        %296 = vmatpush1.msra.mxu0 0.0
        %297 = vmatprep.subr.mxu0 0.0
        %298 = vmatpush1.msra.mxu0 0.0
        %299 = vmatprep.subr.mxu0 0.0
        %300 = vmatpush1.msra.mxu0 0.0
        %301 = vmatprep.subr.mxu0 0.0
        %302 = vmatpush1.msra.mxu0 0.0
        %303 = vmatprep.subr.mxu0 0.0
        %304 = vmatpush1.msra.mxu0 0.0
        %305 = vmatprep.subr.mxu0 0.0
        %306 = vmatpush1.msra.mxu0 0.0
        %307 = vmatprep.subr.mxu0 0.0
        %308 = vmatpush1.msra.mxu0 0.0
        %309 = vmatprep.subr.mxu0 0.0
        %310 = vmatpush1.msra.mxu0 0.0
        %311 = vmatprep.subr.mxu0 0.0
        %312 = vmatpush1.msra.mxu0 0.0
        %313 = vmatprep.subr.mxu0 0.0
        %314 = vmatpush1.msra.mxu0 0.0
        %315 = vmatprep.subr.mxu0 0.0
        %316 = vmatpush1.msra.mxu0 0.0
        %317 = vmatprep.subr.mxu0 0.0
        %318 = vmatpush1.msra.mxu0 0.0
        %319 = vmatprep.subr.mxu0 0.0
        %320 = vmatpush1.msra.mxu0 0.0
        %321 = vmatprep.subr.mxu0 0.0
        %322 = vmatpush1.msra.mxu0 0.0
        %323 = vmatprep.subr.mxu0 0.0
        %324 = vmatpush1.msra.mxu0 0.0
        %325 = vmatprep.subr.mxu0 0.0
        %326 = vmatpush1.msra.mxu0 0.0
        %327 = vmatprep.subr.mxu0 0.0
        %328 = vmatpush1.msra.mxu0 0.0
        %329 = vmatprep.subr.mxu0 0.0
        %330 = vmatpush1.msra.mxu0 0.0
        %331 = vmatprep.subr.mxu0 0.0
        %332 = vmatpush1.msra.mxu0 0.0
        %333 = vmatprep.subr.mxu0 0.0
        %334 = vmatpush1.msra.mxu0 0.0
        %335 = vmatprep.subr.mxu0 0.0
        %336 = vmatpush1.msra.mxu0 0.0
        %337 = vmatprep.subr.mxu0 0.0
        %338 = vmatpush1.msra.mxu0 0.0
        %339 = vmatprep.subr.mxu0 0.0
        %340 = vmatpush1.msra.mxu0 0.0
        %341 = vmatprep.subr.mxu0 0.0
        %342 = vmatpush1.msra.mxu0 0.0
        %343 = vmatprep.subr.mxu0 0.0
        %344 = vmatpush1.msra.mxu0 0.0
        %345 = vmatprep.subr.mxu0 0.0
        %346 = vmatpush1.msra.mxu0 0.0
        %347 = vmatprep.mubr.f32.mxu0 0.0
        %348 = vmatmul.mubr.f32.gmra.mrb[0].mxu0 %v279
        %v349 = vpop.f32.mrb[0].mxu0
        %v350 = vadd.f32 %v275, %v349
        %v351 = vpop.f32.mrb[0].mxu0
        %352 = vdwg.mxu0
        %s353 = scalar_lea.vmem %s1, 16
        %v354 = vld [vmem:[%s353] sm:$0xff]
        %355 = vrot.lane.b32.xlu0 %v194, 126
        %v356 = vpop.permute.xlu0 %355
        %v358 = vsel %vm201, %v354, 0
        %v360 = vsel %vm205, %v356, 0
        %362 = vmatprep.subr.mxu0 0.0
        %363 = vmatpush1.msra.mxu0 %v360
        %364 = vmatprep.subr.mxu0 0.0
        %365 = vmatpush1.msra.mxu0 0.0
        %366 = vmatprep.subr.mxu0 0.0
        %367 = vmatpush1.msra.mxu0 0.0
        %368 = vmatprep.subr.mxu0 0.0
        %369 = vmatpush1.msra.mxu0 0.0
        %370 = vmatprep.subr.mxu0 0.0
        %371 = vmatpush1.msra.mxu0 0.0
        %372 = vmatprep.subr.mxu0 0.0
        %373 = vmatpush1.msra.mxu0 0.0
        %374 = vmatprep.subr.mxu0 0.0
        %375 = vmatpush1.msra.mxu0 0.0
        %376 = vmatprep.subr.mxu0 0.0
        %377 = vmatpush1.msra.mxu0 0.0
        %378 = vmatprep.subr.mxu0 0.0
        %379 = vmatpush1.msra.mxu0 0.0
        %380 = vmatprep.subr.mxu0 0.0
        %381 = vmatpush1.msra.mxu0 0.0
        %382 = vmatprep.subr.mxu0 0.0
        %383 = vmatpush1.msra.mxu0 0.0
        %384 = vmatprep.subr.mxu0 0.0
        %385 = vmatpush1.msra.mxu0 0.0
        %386 = vmatprep.subr.mxu0 0.0
        %387 = vmatpush1.msra.mxu0 0.0
        %388 = vmatprep.subr.mxu0 0.0
        %389 = vmatpush1.msra.mxu0 0.0
        %390 = vmatprep.subr.mxu0 0.0
        %391 = vmatpush1.msra.mxu0 0.0
        %392 = vmatprep.subr.mxu0 0.0
        %393 = vmatpush1.msra.mxu0 0.0
        %394 = vmatprep.subr.mxu0 0.0
        %395 = vmatpush1.msra.mxu0 0.0
        %396 = vmatprep.subr.mxu0 0.0
        %397 = vmatpush1.msra.mxu0 0.0
        %398 = vmatprep.subr.mxu0 0.0
        %399 = vmatpush1.msra.mxu0 0.0
        %400 = vmatprep.subr.mxu0 0.0
        %401 = vmatpush1.msra.mxu0 0.0
        %402 = vmatprep.subr.mxu0 0.0
        %403 = vmatpush1.msra.mxu0 0.0
        %404 = vmatprep.subr.mxu0 0.0
        %405 = vmatpush1.msra.mxu0 0.0
        %406 = vmatprep.subr.mxu0 0.0
        %407 = vmatpush1.msra.mxu0 0.0
        %408 = vmatprep.subr.mxu0 0.0
        %409 = vmatpush1.msra.mxu0 0.0
        %410 = vmatprep.subr.mxu0 0.0
        %411 = vmatpush1.msra.mxu0 0.0
        %412 = vmatprep.subr.mxu0 0.0
        %413 = vmatpush1.msra.mxu0 0.0
        %414 = vmatprep.subr.mxu0 0.0
        %415 = vmatpush1.msra.mxu0 0.0
        %416 = vmatprep.subr.mxu0 0.0
        %417 = vmatpush1.msra.mxu0 0.0
        %418 = vmatprep.subr.mxu0 0.0
        %419 = vmatpush1.msra.mxu0 0.0
        %420 = vmatprep.subr.mxu0 0.0
        %421 = vmatpush1.msra.mxu0 0.0
        %422 = vmatprep.subr.mxu0 0.0
        %423 = vmatpush1.msra.mxu0 0.0
        %424 = vmatprep.subr.mxu0 0.0
        %425 = vmatpush1.msra.mxu0 0.0
        %426 = vmatprep.mubr.f32.mxu0 0.0
        %427 = vmatmul.mubr.f32.gmra.mrb[0].mxu0 %v358
        %v428 = vpop.f32.mrb[0].mxu0
        %v429 = vadd.f32 0.0, %v428
        %v430 = vpop.f32.mrb[0].mxu0
        %431 = vdwg.mxu0
        %v432 = vadd.f32 %v350, %v429
        %v433 = vld [vmem:[%s2] sm:$0xff]
        %435 = vset.pattern.permute.xlu0 0
        %436 = vperm.xlu0 %435, %v433
        %v437 = vpop.permute.xlu0 %436
        %v439 = vmul.f32 %v432, %v437
        %v440 = vld [vmem:[%s3] sm:$0xff]
        %442 = vset.pattern.permute.xlu0 0
        %443 = vperm.xlu0 %442, %v440
        %v444 = vpop.permute.xlu0 %443
        %v446 = vadd.f32 %v439, %v444
        %vm447 = vcmask 113664
        %448 = vst.msk [vmem:[%s188] sm:$0xff] %vm447, %v446
        %s449 = sand.u32 %s115, 1
        %s450 = scalar_lea.sflag [#allocation3], %s449
        %s451 = sand.u32 %s115, 1
        %s452 = smul.addr %s451, 8
        %s453 = scalar_lea.vmem [#allocation2], %s452
        // Predicated region
        $region37: #{relu_conv_bn.3} parent=35 // pred_check
          %p454 = pneg %p125
        $region38: #{relu_conv_bn.3} parent=35 // pred_check_branch
          %456 = sbr.rel (%p454) target = $region40
        $region39: #{relu_conv_bn.3} parent=35 // pred_region
          %s458 = ssub.s32 128, 128
          %459 = vsyncadd %s450, %s458
          %s460 = smul.addr %s18, 128
          %s461 = scalar_lea.hbm %s4, %s460
          %s463 = sshll.u32 %s453, 4
          %s464 = int_to_ptr.vmem [resolvable:$true] %s463
          %466 = dma.vmem_to_hbm [thread:$0]  %s464, 128, %s461, %s450
        $region40: #{relu_conv_bn.3} parent=35 // pred_fallthru
          _
      $region36: #{relu_conv_bn.3} parent=5 // pred_fallthru
        _
      %p467 = scmp.le.s32.totalorder 2, %s13
      // Predicated region
      $region41: #{relu_conv_bn.3} parent=5 // pred_check
        %p468 = pneg %p467
      $region42: #{relu_conv_bn.3} parent=5 // pred_check_branch
        %470 = sbr.rel (%p468) target = $region44
      $region43: #{relu_conv_bn.3} parent=5 // pred_region
        %s471 = ssub.s32 %s13, 2
        // Predicated region
        $region45: #{relu_conv_bn.3} parent=43 // pred_check
          %p472 = pneg %p131
        $region46: #{relu_conv_bn.3} parent=43 // pred_check_branch
          %474 = sbr.rel (%p472) target = $region48
        $region47: #{relu_conv_bn.3} parent=43 // pred_region
          %s475 = sand.u32 %s116, 1
          %s476 = scalar_lea.sflag [#allocation3], %s475
          %s477 = sand.u32 %s116, 1
          %s478 = smul.addr %s477, 8
          %s479 = scalar_lea.vmem [#allocation2], %s478
          %480 = dma.done %s476, 128
        $region48: #{relu_conv_bn.3} parent=43 // pred_fallthru
          _
      $region44: #{relu_conv_bn.3} parent=5 // pred_fallthru
        _
    $region6: #{relu_conv_bn.3} parent=1 // loop_footer
      %s17 = sadd.s32 1, %s13
    $region7: #{relu_conv_bn.3} parent=1 // loop_footer_branch
      %12 = sbr.rel target = $region3
    $region8: #{relu_conv_bn.3} parent=1 // loop_exit
      _
    %481 = vsyncpa [#allocation3], 1
    %s482 = scalar_lea.sflag [#allocation3], 1
    %483 = vsyncpa %s482, 1

</llo_original>
